<compile_context>
chip_gen: v6e
topology: v6e:2x2x1
jax: 0.10.0
libtpu: 0.0.40
codegen_flags: <defaults>
</compile_context>

<pallas_src>
import jax
import jax.numpy as jnp
from jax.experimental import pallas as pl
from jax.experimental.pallas import tpu as pltpu


def _round_up(x, m):
    return ((x + m - 1) // m) * m


_SINGLE_BUFFER_BYTES = 512 * 1024  # below this, double-buffering a constant block is free


def _vmem_limit_bytes():
    """Per-generation VMEM limit (capacity minus headroom), with a safe fallback."""
    try:
        cap = int(getattr(pltpu.get_tpu_info(), "vmem_capacity_bytes", 0))
        if cap > 0:
            # ~3/4 of physical: 48 MiB on v7x (64 MiB/TC), 96 MiB on v5e/v6e (128 MiB).
            return max(32 * 1024 * 1024, cap * 3 // 4)
    except Exception:
        pass
    return 64 * 1024 * 1024


def _make_node_apply_kernel(compute_dtype):
    def kernel(h_ref, w_ref, b_ref, o_ref):
        # h_ref: (tm, K) f32   w_ref: (K, out_p) bf16   b_ref: (1, out_p) f32
        h = h_ref[...]
        if compute_dtype is not None and h.dtype != compute_dtype:
            h = h.astype(compute_dtype)          # in-kernel cast: no extra HBM pass
        acc = jnp.dot(h, w_ref[...], preferred_element_type=jnp.float32)
        acc = acc + b_ref[...]                   # bias broadcast over rows (f32)
        o_ref[...] = jnp.maximum(acc, 0.0).astype(o_ref.dtype)   # ReLU
    return kernel


def _const_spec(shape, nbytes):
    """BlockSpec for a grid-constant block; single-buffer it once it is large."""
    index_map = lambda i: (0, 0)
    if nbytes >= _SINGLE_BUFFER_BYTES:
        try:
            return pl.BlockSpec(shape, index_map, pipeline_mode=pl.Buffered(1))
        except TypeError:       # older jax without pipeline_mode kwarg
            pass
    return pl.BlockSpec(shape, index_map)


def node_apply(h, weight_t, bias, *, tm=None, compute_dtype=jnp.bfloat16):
    """ReLU(h @ weight_t + bias) via a Pallas TPU kernel.

    h        : [N, K]    node features (K = k * in_feats)
    weight_t : [K, out]  transposed nn.Linear weight
    bias     : [out]     nn.Linear bias

    Note: matmul operands are rounded to bf16 (f32 MXU accumulation), so results
    differ from a pure-f32 PyTorch reference at ~bf16 relative tolerance.
    """
    N, K = h.shape
    Kw, out = weight_t.shape
    assert Kw == K
    out_dtype = h.dtype

    # --- output lane width: pad to 128 lanes only when it pays off ------------
    if out % 128 == 0 or out < 128:
        out_p = out                             # keep true width (no 4x write amp / slice)
    else:
        out_p = _round_up(out, 128)             # lane-dense unmasked stores
    if out_p != out:
        weight_t = jnp.pad(weight_t, ((0, 0), (0, out_p - out)))
        bias = jnp.pad(bias, (0, out_p - out))
    bias2d = bias.reshape(1, out_p).astype(jnp.float32)
    w_c = weight_t.astype(compute_dtype) if compute_dtype is not None else weight_t

    # --- per-generation VMEM budget and row-tile selection ---------------------
    vmem_limit = _vmem_limit_bytes()
    budget = vmem_limit - 2 * 1024 * 1024       # headroom for compiler scratch

    h_item = jnp.dtype(h.dtype).itemsize        # h streamed in its own dtype (f32)
    o_item = jnp.dtype(out_dtype).itemsize
    w_item = jnp.dtype(w_c.dtype).itemsize
    w_bytes = K * out_p * w_item
    b_bytes = out_p * 4
    w_bufs = 1 if w_bytes >= _SINGLE_BUFFER_BYTES else 2
    resident = w_bufs * w_bytes + 2 * b_bytes
    if resident > budget // 2:
        # TODO(synk): add an innermost "arbitrary" K grid axis with an f32 (tm, out_p)
        # VMEM accumulator (zero-init at k==0, bias+ReLU+store at k==last, K zero-padded
        # to the K-tile) once the full-K weight tile no longer fits VMEM (v7x first).
        raise NotImplementedError("full-K weight tile does not fit VMEM; K-split not implemented")

    per_row = 2 * K * h_item + 2 * out_p * o_item   # double-buffered h and out tiles
    if tm is None:
        max_tm = max(8, ((budget - resident) // per_row) // 8 * 8)
        tm = min(2048, max_tm, _round_up(N, 8))
        # Give v7x's second TensorCore work when N allows it (grid >= 2).
        if N >= 32 and pl.cdiv(N, tm) < 2:
            tm = max(8, _round_up(pl.cdiv(N, 2), 8))
    if N < 8:
        tm = N                                   # block equal to full dim is allowed
    grid = (pl.cdiv(N, tm),)                     # ragged last tile handled by masking

    cost = pl.CostEstimate(
        flops=2 * N * K * out_p,
        transcendentals=0,
        bytes_accessed=N * K * h_item + w_bytes + b_bytes + N * out_p * o_item,
    )

    out_full = pl.pallas_call(
        _make_node_apply_kernel(compute_dtype),
        out_shape=jax.ShapeDtypeStruct((N, out_p), out_dtype),
        grid_spec=pltpu.PrefetchScalarGridSpec(
            num_scalar_prefetch=0,
            grid=grid,
            in_specs=[
                pl.BlockSpec((tm, K), lambda i: (i, 0)),      # streaming node rows (f32)
                _const_spec((K, out_p), w_bytes),             # weight, VMEM-resident
                _const_spec((1, out_p), b_bytes),             # bias, VMEM-resident
            ],
            out_specs=pl.BlockSpec((tm, out_p), lambda i: (i, 0)),
        ),
        compiler_params=pltpu.CompilerParams(
            dimension_semantics=("parallel",),   # row tiles are independent
            vmem_limit_bytes=vmem_limit,
        ),
        cost_estimate=cost,
    )(h, w_c, bias2d)

    # Only a lane slice may be needed (no row padding was ever materialized).
    return out_full if out_p == out else out_full[:, :out]


if __name__ == "__main__":
    # Module config: in_feats=8, k=4 -> linear input dim K=32, out_feats=32.
    in_feats, k, out_feats = 8, 4, 32
    K = k * in_feats
    N = 64  # number of graph nodes

    key = jax.random.PRNGKey(0)
    k_h, k_w, k_b = jax.random.split(key, 3)

    h = jax.random.normal(k_h, (N, K), dtype=jnp.float32)
    # nn.Linear weight is (out_feats, K); store its transpose for the kernel.
    weight = jax.random.normal(k_w, (out_feats, K), dtype=jnp.float32) * 0.1
    bias = jax.random.normal(k_b, (out_feats,), dtype=jnp.float32) * 0.1
    weight_t = weight.T

    out = node_apply(h, weight_t, bias)
    out = jax.block_until_ready(out)

    # Reference with matching bf16 operand rounding (kernel accumulates in f32).
    h_c = h.astype(jnp.bfloat16).astype(jnp.float32)
    w_c = weight_t.astype(jnp.bfloat16).astype(jnp.float32)
    ref = jnp.maximum(h_c @ w_c + bias[None, :], 0.0)

    assert out.shape == (N, out_feats)
    assert jnp.allclose(out, ref, atol=1e-4, rtol=1e-4), "mismatch vs reference"

    print("KERNEL_OK")
</pallas_src>

<mosaic_0001>
module attributes {stable_mosaic.version = 11 : i64} {
  func.func @kernel(%arg0: i32, %arg1: memref<32x32xf32, #tpu.memory_space<vmem>>, %arg2: memref<32x32xbf16, #tpu.memory_space<vmem>>, %arg3: memref<1x32xf32, #tpu.memory_space<vmem>>, %arg4: memref<32x32xf32, #tpu.memory_space<vmem>>) attributes {dimension_semantics = [#tpu.dimension_semantics<parallel>], iteration_bounds = array<i64: 2>, scalar_prefetch = 0 : i64, scratch_operands = 0 : i64, tpu.core_type = #tpu.core_type<tc>, window_params = [{transform_indices = @transform_0, window_bounds = array<i64: 32, 32>}, {pipeline_mode = #tpu.pipeline_mode<synchronous>, transform_indices = @transform_1, window_bounds = array<i64: 32, 32>}, {pipeline_mode = #tpu.pipeline_mode<synchronous>, transform_indices = @transform_2, window_bounds = array<i64: 1, 32>}, {transform_indices = @transform_3, window_bounds = array<i64: 32, 32>}]} {
    %c0 = arith.constant 0 : index
    %c0_0 = arith.constant 0 : index
    %0 = vector.load %arg1[%c0, %c0_0] : memref<32x32xf32, #tpu.memory_space<vmem>>, vector<32x32xf32>
    %1 = arith.truncf %0 : vector<32x32xf32> to vector<32x32xbf16>
    %c0_1 = arith.constant 0 : index
    %c0_2 = arith.constant 0 : index
    %2 = vector.load %arg2[%c0_1, %c0_2] : memref<32x32xbf16, #tpu.memory_space<vmem>>, vector<32x32xbf16>
    %cst = arith.constant dense<0.000000e+00> : vector<32x32xf32>
    %3 = tpu.matmul %1, %2, %cst {dimension_numbers = #tpu.dot_dimension_numbers<[1], [0], [0], [1], [0, 0, 1, 1], [], []>} : vector<32x32xbf16>, vector<32x32xbf16>, vector<32x32xf32> -> vector<32x32xf32>
    %c0_3 = arith.constant 0 : index
    %c0_4 = arith.constant 0 : index
    %4 = vector.load %arg3[%c0_3, %c0_4] : memref<1x32xf32, #tpu.memory_space<vmem>>, vector<1x32xf32>
    %5 = vector.broadcast %4 : vector<1x32xf32> to vector<32x32xf32>
    %6 = arith.addf %3, %5 : vector<32x32xf32>
    %cst_5 = arith.constant 0.000000e+00 : f32
    %7 = vector.broadcast %cst_5 : f32 to vector<32x32xf32>
    %8 = arith.maximumf %6, %7 : vector<32x32xf32>
    %c0_6 = arith.constant 0 : index
    %c0_7 = arith.constant 0 : index
    %9 = vector.load %arg4[%c0_6, %c0_7] : memref<32x32xf32, #tpu.memory_space<vmem>>, vector<32x32xf32>
    tpu.vector_store %arg4[%c0_6, %c0_7], %8 {strides = array<i32>} : memref<32x32xf32, #tpu.memory_space<vmem>>, vector<32x32xf32>,
    return
  }
  func.func @transform_0(%arg0: i32) -> (i32, i32) {
    %c0_i32 = arith.constant 0 : i32
    %c0_i32_0 = arith.constant 0 : i32
    return %arg0, %c0_i32 : i32, i32
  }
  func.func @transform_1(%arg0: i32) -> (i32, i32) {
    %c0_i32 = arith.constant 0 : i32
    %c0_i32_0 = arith.constant 0 : i32
    %c0_i32_1 = arith.constant 0 : i32
    return %c0_i32, %c0_i32_0 : i32, i32
  }
  func.func @transform_2(%arg0: i32) -> (i32, i32) {
    %c0_i32 = arith.constant 0 : i32
    %c0_i32_0 = arith.constant 0 : i32
    %c0_i32_1 = arith.constant 0 : i32
    return %c0_i32, %c0_i32_0 : i32, i32
  }
  func.func @transform_3(%arg0: i32) -> (i32, i32) {
    %c0_i32 = arith.constant 0 : i32
    %c0_i32_0 = arith.constant 0 : i32
    return %arg0, %c0_i32 : i32, i32
  }
}

</mosaic_0001>

<llo_original>
// kernel: tpu_custom_call.1
$region0: #{tpu_custom_call.1}
  #allocation0 [shape = 'u32[]', space=smem, size = 0x4, offset = 0x4, fixed_abs, tag = 'smem constant byte address 0x4 - core index']
  #allocation1 [shape = 'u32[144,128]{1,0:T(1,128)}', space=vmem, size = 0x12000, scoped, tag = 'internal scratch']
  %s0 = inlined_call_operand.vmem [shape: f32[64,32], index: 0, kind: input, shape index: {}]
  %s1 = inlined_call_operand.vmem [shape: bf16[32,32], index: 1, kind: input, shape index: {}]
  %s2 = inlined_call_operand.vmem [shape: f32[1,32], index: 2, kind: input, shape index: {}]
  %s3 = inlined_call_operand.vmem [shape: f32[64,32], index: 3, kind: output, shape index: {}]
  %s4 = sld [smem:[#allocation0]]
  $region45: #{tpu_custom_call.1} parent=0
    _
  %s6 = ssub.s32 1, %s4
  %s7 = scalar_select 0, %s6, %s4
  loop: start=0, step=1, limit=4
  $region2: #{tpu_custom_call.1} parent=0 // loop_pre_header
    _
  $region3: #{tpu_custom_call.1} parent=0 // loop_header
    %s9 = sphi 0, %s13
    %p10 = scmp.ge.s32.totalorder %s9, 4
    %s19 = sphi 0, %s21
    %s22 = sphi 0, %s19
    %s23 = sphi 0, %s22
    %s39 = sphi 0, %s23
    %s43 = sphi 0, %s43
    %s45 = sphi 0, %s43
    %s46 = sphi 0, %s45
    %s60 = sphi 0, %s46
    %s64 = sphi 0, %s64
    %s66 = sphi 0, %s64
    %s67 = sphi 0, %s66
    %s81 = sphi 0, %s67
    %s87 = sphi 0, %s89
    %s90 = sphi 0, %s87
    %s91 = sphi 0, %s90
    %s107 = sphi 0, %s91
  $region4: #{tpu_custom_call.1} parent=0 // loop_header_branch
    %12 = sbr.rel (%p10) target = $region8
  $region5: #{tpu_custom_call.1} parent=0 // loop_body
    %s14 = ssub.s32 %s9, 1
    %s15 = ssub.s32 %s9, 2
    %s16 = sadd.s32 %s9, 1
    %s17 = ssub.s32 %s9, %s16
    %p18 = scmp.eq.s32.totalorder %s17, 0
    %s20 = sadd.s32 %s19, 1
    %s21 = scalar_select %p18, %s19, %s20
    %p24 = pneg %p18
    %p25 = scmp.eq.s32.totalorder %s9, 1
    %p26 = por %p24, %p25
    %p27 = scmp.ne.s32.totalorder %s19, %s22
    %p28 = scmp.eq.s32.totalorder %s9, 0
    %p29 = por %p27, %p28
    %p30 = scmp.ne.s32.totalorder %s19, %s22
    %p31 = scmp.eq.s32.totalorder %s14, 1
    %p32 = por %p30, %p31
    %p33 = scmp.ne.s32.totalorder %s22, %s23
    %p34 = scmp.eq.s32.totalorder %s14, 0
    %p35 = por %p33, %p34
    %p36 = scmp.ne.s32.totalorder %s22, %s23
    %p37 = scmp.eq.s32.totalorder %s15, 1
    %p38 = por %p36, %p37
    %p40 = scmp.ne.s32.totalorder %s23, %s39
    %p41 = scmp.eq.s32.totalorder %s15, 0
    %p42 = por %p40, %p41
    %s44 = sadd.s32 %s43, 1
    %p47 = scmp.eq.s32.totalorder %s9, 1
    %p48 = scmp.ne.s32.totalorder %s43, %s45
    %p49 = scmp.eq.s32.totalorder %s9, 0
    %p50 = por %p48, %p49
    %p51 = scmp.ne.s32.totalorder %s43, %s45
    %p52 = scmp.eq.s32.totalorder %s14, 1
    %p53 = por %p51, %p52
    %p54 = scmp.ne.s32.totalorder %s45, %s46
    %p55 = scmp.eq.s32.totalorder %s14, 0
    %p56 = por %p54, %p55
    %p57 = scmp.ne.s32.totalorder %s45, %s46
    %p58 = scmp.eq.s32.totalorder %s15, 1
    %p59 = por %p57, %p58
    %p61 = scmp.ne.s32.totalorder %s46, %s60
    %p62 = scmp.eq.s32.totalorder %s15, 0
    %p63 = por %p61, %p62
    %s65 = sadd.s32 %s64, 1
    %p68 = scmp.eq.s32.totalorder %s9, 1
    %p69 = scmp.ne.s32.totalorder %s64, %s66
    %p70 = scmp.eq.s32.totalorder %s9, 0
    %p71 = por %p69, %p70
    %p72 = scmp.ne.s32.totalorder %s64, %s66
    %p73 = scmp.eq.s32.totalorder %s14, 1
    %p74 = por %p72, %p73
    %p75 = scmp.ne.s32.totalorder %s66, %s67
    %p76 = scmp.eq.s32.totalorder %s14, 0
    %p77 = por %p75, %p76
    %p78 = scmp.ne.s32.totalorder %s66, %s67
    %p79 = scmp.eq.s32.totalorder %s15, 1
    %p80 = por %p78, %p79
    %p82 = scmp.ne.s32.totalorder %s67, %s81
    %p83 = scmp.eq.s32.totalorder %s15, 0
    %p84 = por %p82, %p83
    %s85 = ssub.s32 %s9, %s16
    %p86 = scmp.eq.s32.totalorder %s85, 0
    %s88 = sadd.s32 %s87, 1
    %s89 = scalar_select %p86, %s87, %s88
    %p92 = pneg %p86
    %p93 = scmp.eq.s32.totalorder %s9, 1
    %p94 = por %p92, %p93
    %p95 = scmp.ne.s32.totalorder %s87, %s90
    %p96 = scmp.eq.s32.totalorder %s9, 0
    %p97 = por %p95, %p96
    %p98 = scmp.ne.s32.totalorder %s87, %s90
    %p99 = scmp.eq.s32.totalorder %s14, 1
    %p100 = por %p98, %p99
    %p101 = scmp.ne.s32.totalorder %s90, %s91
    %p102 = scmp.eq.s32.totalorder %s14, 0
    %p103 = por %p101, %p102
    %p104 = scmp.ne.s32.totalorder %s90, %s91
    %p105 = scmp.eq.s32.totalorder %s15, 1
    %p106 = por %p104, %p105
    %p108 = scmp.ne.s32.totalorder %s91, %s107
    %p109 = scmp.eq.s32.totalorder %s15, 0
    %p110 = por %p108, %p109
    %p111 = scmp.le.s32.totalorder 1, %s9
    %p112 = scmp.lt.s32.totalorder %s9, 3
    %p113 = pnand %p111, %p112
    %p114 = pneg %p113
    // Predicated region
    $region9: #{tpu_custom_call.1} parent=5 // pred_check
      _
    $region10: #{tpu_custom_call.1} parent=5 // pred_check_branch
      %116 = sbr.rel (%p113) target = $region12
    $region11: #{tpu_custom_call.1} parent=5 // pred_region
      %s117 = ssub.s32 %s9, 1
      // Predicated region
      $region13: #{tpu_custom_call.1} parent=11 // pred_check
        %p118 = pneg %p56
      $region14: #{tpu_custom_call.1} parent=11 // pred_check_branch
        %120 = sbr.rel (%p118) target = $region16
      $region15: #{tpu_custom_call.1} parent=11 // pred_region
        _
      $region16: #{tpu_custom_call.1} parent=11 // pred_fallthru
        _
      // Predicated region
      $region17: #{tpu_custom_call.1} parent=11 // pred_check
        %p121 = pneg %p77
      $region18: #{tpu_custom_call.1} parent=11 // pred_check_branch
        %123 = sbr.rel (%p121) target = $region20
      $region19: #{tpu_custom_call.1} parent=11 // pred_region
        _
      $region20: #{tpu_custom_call.1} parent=11 // pred_fallthru
        _
    $region12: #{tpu_custom_call.1} parent=5 // pred_fallthru
      _
    %p124 = scmp.lt.s32.totalorder %s9, 2
    // Predicated region
    $region21: #{tpu_custom_call.1} parent=5 // pred_check
      %p125 = pneg %p124
    $region22: #{tpu_custom_call.1} parent=5 // pred_check_branch
      %127 = sbr.rel (%p125) target = $region24
    $region23: #{tpu_custom_call.1} parent=5 // pred_region
      // Predicated region
      $region25: #{tpu_custom_call.1} parent=23 // pred_check
        %p128 = pneg %p29
      $region26: #{tpu_custom_call.1} parent=23 // pred_check_branch
        %130 = sbr.rel (%p128) target = $region28
      $region27: #{tpu_custom_call.1} parent=23 // pred_region
        %s131 = smul.u32 4, %s9
        %p132 = scmp.lt.s32.totalorder %s131, 7
        %s133 = scalar_select %p132, %s131, 7
        %s134 = smul.addr %s133, 8
        %s135 = scalar_lea.vmem %s0, %s134
        %s136 = smul.u32 4, %s9
      $region28: #{tpu_custom_call.1} parent=23 // pred_fallthru
        _
    $region24: #{tpu_custom_call.1} parent=5 // pred_fallthru
      _
    %p137 = scmp.le.s32.totalorder 1, %s9
    %p138 = scmp.lt.s32.totalorder %s9, 3
    %p139 = pnand %p137, %p138
    %p140 = pneg %p139
    // Predicated region
    $region29: #{tpu_custom_call.1} parent=5 // pred_check
      _
    $region30: #{tpu_custom_call.1} parent=5 // pred_check_branch
      %142 = sbr.rel (%p139) target = $region32
    $region31: #{tpu_custom_call.1} parent=5 // pred_region
      %s143 = ssub.s32 %s9, 1
      %s144 = smul.u32 4, %s14
      %p145 = scmp.lt.s32.totalorder %s144, 7
      %s146 = scalar_select %p145, %s144, 7
      %s147 = smul.addr %s146, 8
      %s148 = scalar_lea.vmem %s0, %s147
      %p149 = pneg %p35
      %p150 = pneg %p32
      %p151 = pneg %p56
      %p152 = pneg %p53
      %p153 = pneg %p77
      %p154 = pneg %p74
      %p155 = pneg %p103
      %p156 = pneg %p100
      %s157 = smul.u32 4, %s14
      %p158 = scmp.lt.s32.totalorder %s157, 7
      %s159 = scalar_select %p158, %s157, 7
      %s160 = smul.addr %s159, 8
      %s161 = scalar_lea.vmem %s3, %s160
      %s162 = smul.u32 4, %s14
      %p163 = scmp.lt.s32.totalorder %s162, 7
      %s164 = scalar_select %p163, %s162, 7
      %s165 = smul.addr %s164, 8
      %s166 = scalar_lea.vmem %s0, %s165
      %s167 = smul.u32 4, %s14
      %s168 = smul.u32 4, %s14
      %p169 = scmp.lt.s32.totalorder %s168, 7
      %s170 = scalar_select %p169, %s168, 7
      %s171 = smul.addr %s170, 8
      %s172 = scalar_lea.vmem %s3, %s171
      %s173 = smul.u32 4, %s14
      %v175 = vld [vmem:[%s166] sm:$0xff]
      %v176 = vld [vmem:[%s166 + $0x8] sm:$0xff]
      %v177 = vld [vmem:[%s166 + $0x10] sm:$0xff]
      %v178 = vld [vmem:[%s166 + $0x18] sm:$0xff]
      %v179 = vpack.c.bf16 %v176, %v175
      %v180 = vpack.c.bf16 %v178, %v177
      %v181 = vld [vmem:[%s1] sm:$0xf]
      %v182 = vld [vmem:[%s1 + $0x4] sm:$0xf]
      %v183 = vld [vmem:[%s1 + $0x8] sm:$0xf]
      %v184 = vld [vmem:[%s1 + $0xc] sm:$0xf]
      %v185 = vld [vmem:[%s2] sm:$0x1]
      %v187 = vlaneseq
      %v188 = vshrl.u32 %v187, 7
      %v189 = vsub.s32 0, %v188
      %v190 = vrot.slane %v185, %v189
      %v196 = vunpack.c.l.b16 %v181
      %v197 = vunpack.c.l.b16 %v182
      %v198 = vunpack.c.l.b16 %v183
      %v199 = vunpack.c.l.b16 %v184
      %v200 = vpack.c.b16 %v197, %v196
      %v201 = vpack.c.b16 %v199, %v198
      %vm204 = vcmask 261120
      %v206 = vsel %vm204, %v179, 0
      %v209 = vsel %vm204, %v180, 0
      %211 = vmatprep.subr.bf16.mxu0 0
      %212 = vmatpush1.bf16.msra.mxu0 0
      %213 = vmatprep.subr.bf16.mxu0 0
      %214 = vmatpush1.bf16.msra.mxu0 0
      %215 = vmatprep.subr.bf16.mxu0 0
      %216 = vmatpush1.bf16.msra.mxu0 0
      %217 = vmatprep.subr.bf16.mxu0 0
      %218 = vmatpush1.bf16.msra.mxu0 0
      %219 = vmatprep.subr.bf16.mxu0 0
      %220 = vmatpush1.bf16.msra.mxu0 0
      %221 = vmatprep.subr.bf16.mxu0 0
      %222 = vmatpush1.bf16.msra.mxu0 0
      %223 = vmatprep.subr.bf16.mxu0 0
      %224 = vmatpush1.bf16.msra.mxu0 %v201
      %225 = vmatprep.subr.bf16.mxu0 0
      %226 = vmatpush1.bf16.msra.mxu0 %v200
      %227 = vmatprep.subr.bf16.mxu0 0
      %228 = vmatpush2.bf16.msra.mxu0 0
      %229 = vmatprep.subr.bf16.mxu0 0
      %230 = vmatpush2.bf16.msra.mxu0 0
      %231 = vmatprep.subr.bf16.mxu0 0
      %232 = vmatpush2.bf16.msra.mxu0 0
      %233 = vmatprep.subr.bf16.mxu0 0
      %234 = vmatpush2.bf16.msra.mxu0 0
      %235 = vmatprep.subr.bf16.mxu0 0
      %236 = vmatpush2.bf16.msra.mxu0 0
      %237 = vmatprep.subr.bf16.mxu0 0
      %238 = vmatpush2.bf16.msra.mxu0 0
      %239 = vmatprep.subr.bf16.mxu0 0
      %240 = vmatpush2.bf16.msra.mxu0 0
      %241 = vmatprep.subr.bf16.mxu0 0
      %242 = vmatpush2.bf16.msra.mxu0 0
      %243 = vmatprep.mubr.bf16.mxu0 0
      %244 = vmatmul.mubr.bf16.gmra.mxu0 %v206
      %v245 = vpop.f32.mrf.mxu0
      %v246 = vadd.f32 %v190, %v245
      %v247 = vpop.f32.mrf.mxu0
      %v248 = vpop.f32.mrf.mxu0
      %v249 = vadd.f32 %v190, %v248
      %v250 = vpop.f32.mrf.mxu0
      %251 = vmatprep.mubr.bf16.mxu0 0
      %252 = vmatmul.mubr.bf16.gmra.mxu0 %v209
      %v253 = vpop.f32.mrf.mxu0
      %v254 = vadd.f32 %v190, %v253
      %v255 = vpop.f32.mrf.mxu0
      %v256 = vpop.f32.mrf.mxu0
      %v257 = vadd.f32 %v190, %v256
      %v258 = vpop.f32.mrf.mxu0
      %259 = vdwg.mxu0
      %v260 = vmax.f32 %v246, 0.0
      %v261 = vmax.f32 %v249, 0.0
      %v262 = vmax.f32 %v254, 0.0
      %v263 = vmax.f32 %v257, 0.0
      %264 = vst.msk [vmem:[%s172] sm:$0xff] %vm204, %v260
      %265 = vst.msk [vmem:[%s172 + $0x8] sm:$0xff] %vm204, %v261
      %266 = vst.msk [vmem:[%s172 + $0x10] sm:$0xff] %vm204, %v262
      %267 = vst.msk [vmem:[%s172 + $0x18] sm:$0xff] %vm204, %v263
      %s268 = smul.u32 4, %s14
      %p269 = scmp.lt.s32.totalorder %s268, 7
      %s270 = scalar_select %p269, %s268, 7
      %s271 = smul.addr %s270, 8
      %s272 = scalar_lea.vmem %s3, %s271
      // Predicated region
      $region33: #{tpu_custom_call.1} parent=31 // pred_check
        %p273 = pneg %p100
      $region34: #{tpu_custom_call.1} parent=31 // pred_check_branch
        %275 = sbr.rel (%p273) target = $region36
      $region35: #{tpu_custom_call.1} parent=31 // pred_region
        %s276 = smul.u32 4, %s14
      $region36: #{tpu_custom_call.1} parent=31 // pred_fallthru
        _
    $region32: #{tpu_custom_call.1} parent=5 // pred_fallthru
      _
    %p277 = scmp.le.s32.totalorder 2, %s9
    // Predicated region
    $region37: #{tpu_custom_call.1} parent=5 // pred_check
      %p278 = pneg %p277
    $region38: #{tpu_custom_call.1} parent=5 // pred_check_branch
      %280 = sbr.rel (%p278) target = $region40
    $region39: #{tpu_custom_call.1} parent=5 // pred_region
      %s281 = ssub.s32 %s9, 2
      // Predicated region
      $region41: #{tpu_custom_call.1} parent=39 // pred_check
        %p282 = pneg %p106
      $region42: #{tpu_custom_call.1} parent=39 // pred_check_branch
        %284 = sbr.rel (%p282) target = $region44
      $region43: #{tpu_custom_call.1} parent=39 // pred_region
        %s285 = smul.u32 4, %s15
        %p286 = scmp.lt.s32.totalorder %s285, 7
        %s287 = scalar_select %p286, %s285, 7
        %s288 = smul.addr %s287, 8
        %s289 = scalar_lea.vmem %s3, %s288
      $region44: #{tpu_custom_call.1} parent=39 // pred_fallthru
        _
    $region40: #{tpu_custom_call.1} parent=5 // pred_fallthru
      _
  $region6: #{tpu_custom_call.1} parent=0 // loop_footer
    %s13 = sadd.s32 1, %s9
  $region7: #{tpu_custom_call.1} parent=0 // loop_footer_branch
    %8 = sbr.rel target = $region3
  $region8: #{tpu_custom_call.1} parent=0 // loop_exit
    _

</llo_original>
